<compile_context>
chip_gen: v5e
topology: v5e:2x2
jax: 0.10.0
libtpu: 0.0.40
codegen_flags: <defaults>
</compile_context>

<pallas_src>
import functools

import jax
import jax.numpy as jnp
from jax.experimental import pallas as pl
from jax.experimental.pallas import tpu as pltpu


def _round_up(v, m):
    return ((v + m - 1) // m) * m


def _pow2_tile(limit, default):
    """Largest power-of-two multiple of 128 that is <= min(limit, default)."""
    cap = max(128, min(limit, default))
    t = 128
    while t * 2 <= cap:
        t *= 2
    return t


def _gcn_dgi_kernel(*refs, project, resident_rhs, tk):
    """One (row-tile i, k-tile k) step of PReLU((A_hat @ RHS) [@ W] + b)."""
    if project:
        a_ref, rhs_ref, w_ref, b_ref, alpha_ref, o_ref, acc_ref = refs
    else:
        a_ref, rhs_ref, b_ref, alpha_ref, o_ref, acc_ref = refs

    k = pl.program_id(1)

    @pl.when(k == 0)
    def _init():
        acc_ref[...] = jnp.zeros_like(acc_ref)

    if resident_rhs:
        # RHS is fully VMEM-resident; take the current k-chunk with an aligned
        # dynamic slice (no HBM re-streaming per row tile).
        start = pl.multiple_of(k * tk, tk)
        rhs = rhs_ref[pl.ds(start, tk), :]
    else:
        rhs = rhs_ref[...]

    # Dominant matmul: bf16 operands on the MXU, f32 accumulation in VMEM.
    acc_ref[...] += jnp.dot(a_ref[...], rhs, preferred_element_type=jnp.float32)

    @pl.when(k == pl.num_programs(1) - 1)
    def _finalize():
        acc = acc_ref[...]
        if project:
            # Small f32 projection (no bf16 downcast of the neighbor sum).
            h = jnp.dot(acc, w_ref[...], preferred_element_type=jnp.float32) + b_ref[...]
        else:
            h = acc + b_ref[...]
        alpha = alpha_ref[0, 0]
        o_ref[...] = jnp.where(h > 0, h, alpha * h).astype(o_ref.dtype)


def graph_infomax_forward(x, edge_index, w, b, alpha, *, tm=512, tk=512):
    """pos_z = PReLU(A_hat @ x @ W + b). Returns [N, hidden] float32."""
    N, F = x.shape
    H = w.shape[1]

    # ---- glue: symmetric GCN normalization from edge_index.
    # deg[d] = (# incoming edges to d, duplicates counted) + 1 (self loop)
    src = edge_index[0]
    dst = edge_index[1]
    deg = jnp.ones((N,), jnp.float32).at[dst].add(1.0)
    d_inv_sqrt = jax.lax.rsqrt(deg)

    # ---- tiling / padding decisions
    Np128 = _round_up(max(N, 1), 128)
    tk = _pow2_tile(Np128, tk)
    tm = _pow2_tile(Np128, tm)
    Np = _round_up(Np128, max(tm, tk))          # divisible by both tm and tk
    if Np // tm < 2 and tm > 128:
        tm //= 2                                # >=2 row tiles -> v7x megacore

    Fp = _round_up(max(F, 1), 128)
    Hp = _round_up(max(H, 1), 128)
    project = Fp <= Hp                          # contraction width = min(Fp, Hp)
    Wd = Fp if project else Hp

    # ---- normalized adjacency: ONE f32 scatter (edges + self loops) straight
    # into the padded buffer, then a single cast to bf16.
    rows = jnp.concatenate([dst, jnp.arange(N, dtype=dst.dtype)])
    cols = jnp.concatenate([src, jnp.arange(N, dtype=src.dtype)])
    vals = jnp.concatenate([d_inv_sqrt[dst] * d_inv_sqrt[src], 1.0 / deg])
    A_pad = (jnp.zeros((Np, Np), jnp.float32)
             .at[rows, cols].add(vals)
             .astype(jnp.bfloat16))

    if project:
        rhs = jnp.zeros((Np, Fp), jnp.bfloat16).at[:N, :F].set(x.astype(jnp.bfloat16))
        w_pad = jnp.zeros((Fp, Hp), jnp.float32).at[:F, :H].set(w.astype(jnp.float32))
    else:
        # Cheap O(N*F*H) precompute in XLA; shrinks the N^2 contraction to Hp.
        xw = jnp.dot(x.astype(jnp.float32), w.astype(jnp.float32))
        rhs = jnp.zeros((Np, Hp), jnp.bfloat16).at[:N, :H].set(xw.astype(jnp.bfloat16))
        w_pad = None
    b_pad = jnp.zeros((1, Hp), jnp.float32).at[0, :H].set(b.astype(jnp.float32))
    alpha_arr = jnp.asarray(alpha, jnp.float32).reshape(1, 1)

    # Keep the RHS VMEM-resident when it comfortably fits; otherwise fall back
    # to streaming it per k-tile.
    resident_rhs = 2 * Np * Wd * 2 <= 16 * 1024 * 1024

    grid = (Np // tm, Np // tk)  # (row tiles [parallel], k reduction [arbitrary])

    in_specs = [pl.BlockSpec((tm, tk), lambda i, k: (i, k))]        # A_hat tile
    args = [A_pad, rhs]
    if resident_rhs:
        in_specs.append(pl.BlockSpec((Np, Wd), lambda i, k: (0, 0)))   # resident RHS
    else:
        in_specs.append(pl.BlockSpec((tk, Wd), lambda i, k: (k, 0)))   # streamed RHS
    if project:
        in_specs.append(pl.BlockSpec((Fp, Hp), lambda i, k: (0, 0)))   # W (resident, f32)
        args.append(w_pad)
    in_specs.append(pl.BlockSpec((1, Hp), lambda i, k: (0, 0)))        # bias (resident)
    in_specs.append(pl.BlockSpec(memory_space=pltpu.MemorySpace.SMEM)) # PReLU alpha
    args += [b_pad, alpha_arr]

    # VMEM budget: double-buffered pipeline inputs/outputs + f32 accumulator,
    # with 2x margin, capped below v7x's 64 MiB per-TC VMEM.
    vmem_need = (
        2 * tm * tk * 2                                            # A tiles
        + (2 * Np * Wd * 2 if resident_rhs else 2 * tk * Wd * 2)   # RHS
        + (2 * Fp * Hp * 4 if project else 0)                      # W
        + 2 * Hp * 4                                               # bias
        + 2 * tm * Hp * 4                                          # out tiles
        + tm * Wd * 4                                              # accumulator
    )
    vmem_limit = int(min(max(2 * vmem_need, 32 * 1024 * 1024), 60 * 1024 * 1024))

    kernel = functools.partial(_gcn_dgi_kernel, project=project,
                               resident_rhs=resident_rhs, tk=tk)

    out = pl.pallas_call(
        kernel,
        out_shape=jax.ShapeDtypeStruct((Np, Hp), jnp.float32),
        grid=grid,
        in_specs=in_specs,
        out_specs=pl.BlockSpec((tm, Hp), lambda i, k: (i, 0)),
        scratch_shapes=[pltpu.VMEM((tm, Wd), jnp.float32)],
        compiler_params=pltpu.CompilerParams(
            dimension_semantics=("parallel", "arbitrary"),
            vmem_limit_bytes=vmem_limit,
        ),
    )(*args)

    return out[:N, :H]


if __name__ == "__main__":
    # Small deterministic problem: 16 nodes, 8 input features, hidden=32.
    N, F, H = 16, 8, 32
    key = jax.random.PRNGKey(0)
    kx, kw, kb, ke = jax.random.split(key, 4)

    x = jax.random.normal(kx, (N, F), dtype=jnp.float32)

    # Deterministic parameter init (Glorot-ish W, zero bias, PReLU alpha=0.25).
    w = jax.random.normal(kw, (F, H), dtype=jnp.float32) * (1.0 / jnp.sqrt(F))
    b = jnp.zeros((H,), dtype=jnp.float32)
    alpha = 0.25

    # Deterministic random edge list (2, E).
    E = 40
    src = jax.random.randint(ke, (E,), 0, N)
    dst = jax.random.randint(jax.random.fold_in(ke, 1), (E,), 0, N)
    edge_index = jnp.stack([src, dst], axis=0)

    pos_z = graph_infomax_forward(x, edge_index, w, b, alpha)
    jax.block_until_ready(pos_z)
    assert pos_z.shape == (N, H)
    assert bool(jnp.all(jnp.isfinite(pos_z)))
    print("KERNEL_OK")
</pallas_src>

<mosaic_0001>
module attributes {stable_mosaic.version = 11 : i64} {
  func.func @_gcn_dgi_kernel(%arg0: i32, %arg1: i32, %arg2: memref<128x128xbf16, #tpu.memory_space<vmem>>, %arg3: memref<128x128xbf16, #tpu.memory_space<vmem>>, %arg4: memref<128x128xf32, #tpu.memory_space<vmem>>, %arg5: memref<1x128xf32, #tpu.memory_space<vmem>>, %arg6: memref<1x1xf32, #tpu.memory_space<smem>>, %arg7: memref<128x128xf32, #tpu.memory_space<vmem>>, %arg8: memref<128x128xf32, #tpu.memory_space<vmem>>) attributes {dimension_semantics = [#tpu.dimension_semantics<parallel>, #tpu.dimension_semantics<arbitrary>], iteration_bounds = array<i64: 1, 1>, scalar_prefetch = 0 : i64, scratch_operands = 1 : i64, tpu.core_type = #tpu.core_type<tc>, window_params = [{transform_indices = @transform_0, window_bounds = array<i64: 128, 128>}, {pipeline_mode = #tpu.pipeline_mode<synchronous>, transform_indices = @transform_1, window_bounds = array<i64: 128, 128>}, {pipeline_mode = #tpu.pipeline_mode<synchronous>, transform_indices = @transform_2, window_bounds = array<i64: 128, 128>}, {pipeline_mode = #tpu.pipeline_mode<synchronous>, transform_indices = @transform_3, window_bounds = array<i64: 1, 128>}, {transform_indices = @transform_4, window_bounds = array<i64: 1, 1>}, {transform_indices = @transform_5, window_bounds = array<i64: 128, 128>}]} {
    %c0_i32 = arith.constant 0 : i32
    %0 = arith.cmpi eq, %arg1, %c0_i32 : i32
    %1 = arith.extui %0 : i1 to i32
    %c0_i32_0 = arith.constant 0 : i32
    %2 = arith.cmpi ne, %1, %c0_i32_0 : i32
    scf.if %2 {
      %cst_9 = arith.constant 0.000000e+00 : f32
      %15 = vector.broadcast %cst_9 : f32 to vector<128x128xf32>
      %c0_10 = arith.constant 0 : index
      %c0_11 = arith.constant 0 : index
      %16 = vector.load %arg8[%c0_10, %c0_11] : memref<128x128xf32, #tpu.memory_space<vmem>>, vector<128x128xf32>
      tpu.vector_store %arg8[%c0_10, %c0_11], %15 {strides = array<i32>} : memref<128x128xf32, #tpu.memory_space<vmem>>, vector<128x128xf32>,
    } else {
    }
    %c128_i32 = arith.constant 128 : i32
    %3 = arith.muli %arg1, %c128_i32 : i32
    %4 = tpu.assume_multiple %3, 128 : i32
    %5 = arith.index_cast %4 : i32 to index
    %c0 = arith.constant 0 : index
    %6 = vector.load %arg3[%5, %c0] : memref<128x128xbf16, #tpu.memory_space<vmem>>, vector<128x128xbf16>
    %c0_1 = arith.constant 0 : index
    %c0_2 = arith.constant 0 : index
    %7 = vector.load %arg8[%c0_1, %c0_2] : memref<128x128xf32, #tpu.memory_space<vmem>>, vector<128x128xf32>
    %c0_3 = arith.constant 0 : index
    %c0_4 = arith.constant 0 : index
    %8 = vector.load %arg2[%c0_3, %c0_4] : memref<128x128xbf16, #tpu.memory_space<vmem>>, vector<128x128xbf16>
    %cst = arith.constant dense<0.000000e+00> : vector<128x128xf32>
    %9 = tpu.matmul %8, %6, %cst {dimension_numbers = #tpu.dot_dimension_numbers<[1], [0], [0], [1], [0, 0, 1, 1], [], []>} : vector<128x128xbf16>, vector<128x128xbf16>, vector<128x128xf32> -> vector<128x128xf32>
    %10 = arith.addf %7, %9 : vector<128x128xf32>
    %c0_5 = arith.constant 0 : index
    %c0_6 = arith.constant 0 : index
    %11 = vector.load %arg8[%c0_5, %c0_6] : memref<128x128xf32, #tpu.memory_space<vmem>>, vector<128x128xf32>
    tpu.vector_store %arg8[%c0_5, %c0_6], %10 {strides = array<i32>} : memref<128x128xf32, #tpu.memory_space<vmem>>, vector<128x128xf32>,
    %c0_i32_7 = arith.constant 0 : i32
    %12 = arith.cmpi eq, %arg1, %c0_i32_7 : i32
    %13 = arith.extui %12 : i1 to i32
    %c0_i32_8 = arith.constant 0 : i32
    %14 = arith.cmpi ne, %13, %c0_i32_8 : i32
    scf.if %14 {
      %c0_9 = arith.constant 0 : index
      %c0_10 = arith.constant 0 : index
      %15 = vector.load %arg8[%c0_9, %c0_10] : memref<128x128xf32, #tpu.memory_space<vmem>>, vector<128x128xf32>
      %c0_11 = arith.constant 0 : index
      %c0_12 = arith.constant 0 : index
      %16 = vector.load %arg4[%c0_11, %c0_12] : memref<128x128xf32, #tpu.memory_space<vmem>>, vector<128x128xf32>
      %cst_13 = arith.constant dense<0.000000e+00> : vector<128x128xf32>
      %17 = tpu.matmul %15, %16, %cst_13 {dimension_numbers = #tpu.dot_dimension_numbers<[1], [0], [0], [1], [0, 0, 1, 1], [], []>} : vector<128x128xf32>, vector<128x128xf32>, vector<128x128xf32> -> vector<128x128xf32>
      %c0_14 = arith.constant 0 : index
      %c0_15 = arith.constant 0 : index
      %18 = vector.load %arg5[%c0_14, %c0_15] : memref<1x128xf32, #tpu.memory_space<vmem>>, vector<1x128xf32>
      %19 = vector.broadcast %18 : vector<1x128xf32> to vector<128x128xf32>
      %20 = arith.addf %17, %19 : vector<128x128xf32>
      %c0_16 = arith.constant 0 : index
      %c0_17 = arith.constant 0 : index
      %21 = memref.load %arg6[%c0_16, %c0_17] : memref<1x1xf32, #tpu.memory_space<smem>>
      %cst_18 = arith.constant 0.000000e+00 : f32
      %22 = vector.broadcast %cst_18 : f32 to vector<128x128xf32>
      %23 = arith.cmpf ogt, %20, %22 : vector<128x128xf32>
      %24 = vector.broadcast %21 : f32 to vector<128x128xf32>
      %25 = arith.mulf %24, %20 : vector<128x128xf32>
      %26 = arith.select %23, %20, %25 : vector<128x128xi1>, vector<128x128xf32>
      %c0_19 = arith.constant 0 : index
      %c0_20 = arith.constant 0 : index
      %27 = vector.load %arg7[%c0_19, %c0_20] : memref<128x128xf32, #tpu.memory_space<vmem>>, vector<128x128xf32>
      tpu.vector_store %arg7[%c0_19, %c0_20], %26 {strides = array<i32>} : memref<128x128xf32, #tpu.memory_space<vmem>>, vector<128x128xf32>,
    } else {
    }
    return
  }
  func.func @transform_0(%arg0: i32, %arg1: i32) -> (i32, i32) {
    %c0_i32 = arith.constant 0 : i32
    return %arg0, %arg1 : i32, i32
  }
  func.func @transform_1(%arg0: i32, %arg1: i32) -> (i32, i32) {
    %c0_i32 = arith.constant 0 : i32
    %c0_i32_0 = arith.constant 0 : i32
    %c0_i32_1 = arith.constant 0 : i32
    return %c0_i32, %c0_i32_0 : i32, i32
  }
  func.func @transform_2(%arg0: i32, %arg1: i32) -> (i32, i32) {
    %c0_i32 = arith.constant 0 : i32
    %c0_i32_0 = arith.constant 0 : i32
    %c0_i32_1 = arith.constant 0 : i32
    return %c0_i32, %c0_i32_0 : i32, i32
  }
  func.func @transform_3(%arg0: i32, %arg1: i32) -> (i32, i32) {
    %c0_i32 = arith.constant 0 : i32
    %c0_i32_0 = arith.constant 0 : i32
    %c0_i32_1 = arith.constant 0 : i32
    return %c0_i32, %c0_i32_0 : i32, i32
  }
  func.func @transform_4(%arg0: i32, %arg1: i32) -> (i32, i32) {
    %c0_i32 = arith.constant 0 : i32
    %c0_i32_0 = arith.constant 0 : i32
    %c0_i32_1 = arith.constant 0 : i32
    return %c0_i32, %c0_i32_0 : i32, i32
  }
  func.func @transform_5(%arg0: i32, %arg1: i32) -> (i32, i32) {
    %c0_i32 = arith.constant 0 : i32
    %c0_i32_0 = arith.constant 0 : i32
    return %arg0, %c0_i32 : i32, i32
  }
}

</mosaic_0001>

<llo_original>
// kernel: tpu_custom_call.1
$region0: #{tpu_custom_call.1}
  #allocation0 [shape = 'u32[]', space=smem, size = 0x4, offset = 0x4, fixed_abs, tag = 'smem constant byte address 0x4 - core index']
  #allocation1 [shape = 'u32[72,128]{1,0:T(1,128)}', space=vmem, size = 0x9000, scoped, tag = 'internal scratch']
  #allocation2 [shape = 'f32[128,128]{1,0:T(8,128)}', space=vmem, size = 0x10000, scoped, tag = 'scratch operand']
  #allocation3 [shape = 'f32[1,1]{1,0:T(1,128)S(6)}', space=smem, size = 0x200, scoped, tag = 'scoped memory for tpu_custom_call.1']
  %s0 = inlined_call_operand.hbm [shape: bf16[128,128], index: 0, kind: input, shape index: {}]
  %s1 = inlined_call_operand.hbm [shape: bf16[128,128], index: 1, kind: input, shape index: {}]
  %s2 = inlined_call_operand.hbm [shape: f32[128,128], index: 2, kind: input, shape index: {}]
  %s3 = inlined_call_operand.vmem [shape: f32[1,128], index: 3, kind: input, shape index: {}]
  %s4 = inlined_call_operand.<no memory space> [shape: f32[1,1], index: 4, kind: input, shape index: {}]
  %s5 = inlined_call_operand.hbm [shape: f32[128,128], index: 5, kind: output, shape index: {}]
  %s6 = sld [smem:[#allocation0]]
  $region50: #{tpu_custom_call.1} parent=0
    _
  %s8 = ssub.s32 1, %s6
  %s9 = scalar_select 0, %s8, %s6
  %10 = sst [smem:[#allocation3]] %s4
  $region1: #{tpu_custom_call.1} parent=0
    #allocation4 [shape = 'u8[32768]{0}', space=vmem, size = 0x8000, scoped, tag = 'input window, operand 0, single buffered']
    #allocation5 [shape = 's32[1]{0}', space=sflag, size = 0x4, scoped, tag = 'scoped memory for tpu_custom_call.1']
    #allocation6 [shape = 's32[1]{0}', space=sflag, size = 0x4, scoped, tag = 'scoped memory for tpu_custom_call.1']
    #allocation7 [shape = 'u8[32768]{0}', space=vmem, size = 0x8000, scoped, tag = 'input window, operand 1, single buffered']
    #allocation8 [shape = 's32[1]{0}', space=sflag, size = 0x4, scoped, tag = 'scoped memory for tpu_custom_call.1']
    #allocation9 [shape = 'u8[65536]{0}', space=vmem, size = 0x10000, scoped, tag = 'input window, operand 2, single buffered']
    #allocation10 [shape = 'u8[65536]{0}', space=vmem, size = 0x10000, scoped, tag = 'output window, operand 0, single buffered']
    %11 = vsyncpa [#allocation5], 0
    %12 = vsyncpa [#allocation8], 0
    %13 = vsyncpa [#allocation6], 0
    // Predicated region
    $region2: #{tpu_custom_call.1} parent=1 // pred_check
      _
    $region3: #{tpu_custom_call.1} parent=1 // pred_check_branch
      %15 = sbr.rel (0) target = $region5
    $region4: #{tpu_custom_call.1} parent=1 // pred_region
      %17 = vsyncadd [#allocation5], 0
      %s18 = sshll.u32 %s0, 4
      %s19 = int_to_ptr.hbm [resolvable:$true] %s18
      %s20 = sshll.u32 [#allocation4], 4
      %s21 = int_to_ptr.vmem [resolvable:$true] %s20
      %26 = dma.hbm_to_vmem [thread:$0]  %s19, 1024, %s21, [#allocation5], 64, 64, 4
    $region5: #{tpu_custom_call.1} parent=1 // pred_fallthru
      _
    // Predicated region
    $region6: #{tpu_custom_call.1} parent=1 // pred_check
      _
    $region7: #{tpu_custom_call.1} parent=1 // pred_check_branch
      %28 = sbr.rel (0) target = $region9
    $region8: #{tpu_custom_call.1} parent=1 // pred_region
      %30 = vsyncadd [#allocation8], 0
      %s31 = sshll.u32 %s1, 4
      %s32 = int_to_ptr.hbm [resolvable:$true] %s31
      %s33 = sshll.u32 [#allocation7], 4
      %s34 = int_to_ptr.vmem [resolvable:$true] %s33
      %39 = dma.hbm_to_vmem [thread:$0]  %s32, 1024, %s34, [#allocation8], 64, 64, 4
    $region9: #{tpu_custom_call.1} parent=1 // pred_fallthru
      _
    // Predicated region
    $region10: #{tpu_custom_call.1} parent=1 // pred_check
      _
    $region11: #{tpu_custom_call.1} parent=1 // pred_check_branch
      %41 = sbr.rel (0) target = $region13
    $region12: #{tpu_custom_call.1} parent=1 // pred_region
      %43 = vsyncadd [#allocation8], 0
      %s44 = sshll.u32 %s2, 4
      %s45 = int_to_ptr.hbm [resolvable:$true] %s44
      %s46 = sshll.u32 [#allocation9], 4
      %s47 = int_to_ptr.vmem [resolvable:$true] %s46
      %52 = dma.hbm_to_vmem [thread:$0]  %s45, 2048, %s47, [#allocation8], 128, 128, 8
    $region13: #{tpu_custom_call.1} parent=1 // pred_fallthru
      _
    // Predicated region
    $region14: #{tpu_custom_call.1} parent=1 // pred_check
      _
    $region15: #{tpu_custom_call.1} parent=1 // pred_check_branch
      %54 = sbr.rel (0) target = $region17
    $region16: #{tpu_custom_call.1} parent=1 // pred_region
      _
    $region17: #{tpu_custom_call.1} parent=1 // pred_fallthru
      _
    // Predicated region
    $region18: #{tpu_custom_call.1} parent=1 // pred_check
      _
    $region19: #{tpu_custom_call.1} parent=1 // pred_check_branch
      %56 = sbr.rel (0) target = $region21
    $region20: #{tpu_custom_call.1} parent=1 // pred_region
      _
    $region21: #{tpu_custom_call.1} parent=1 // pred_fallthru
      _
    // Predicated region
    $region22: #{tpu_custom_call.1} parent=1 // pred_check
      _
    $region23: #{tpu_custom_call.1} parent=1 // pred_check_branch
      %58 = sbr.rel (0) target = $region25
    $region24: #{tpu_custom_call.1} parent=1 // pred_region
      %60 = dma.done [#allocation5], 1024
    $region25: #{tpu_custom_call.1} parent=1 // pred_fallthru
      _
    // Predicated region
    $region26: #{tpu_custom_call.1} parent=1 // pred_check
      _
    $region27: #{tpu_custom_call.1} parent=1 // pred_check_branch
      %62 = sbr.rel (0) target = $region29
    $region28: #{tpu_custom_call.1} parent=1 // pred_region
      %64 = dma.done [#allocation8], 1024
    $region29: #{tpu_custom_call.1} parent=1 // pred_fallthru
      _
    // Predicated region
    $region30: #{tpu_custom_call.1} parent=1 // pred_check
      _
    $region31: #{tpu_custom_call.1} parent=1 // pred_check_branch
      %66 = sbr.rel (0) target = $region33
    $region32: #{tpu_custom_call.1} parent=1 // pred_region
      %68 = dma.done [#allocation8], 2048
    $region33: #{tpu_custom_call.1} parent=1 // pred_fallthru
      _
    %p69 = scmp.eq.s32.totalorder 0, 0
    // Predicated region
    $region34: #{tpu_custom_call.1} parent=1 // pred_check
      %p70 = pneg %p69
    $region35: #{tpu_custom_call.1} parent=1 // pred_check_branch
      %72 = sbr.rel (%p70) target = $region37
    $region36: #{tpu_custom_call.1} parent=1 // pred_region
      %73 = vst [vmem:[#allocation2] sm:$0xff] 0.0
      %74 = vst [vmem:[#allocation2 + $0x8] sm:$0xff] 0.0
      %75 = vst [vmem:[#allocation2 + $0x10] sm:$0xff] 0.0
      %76 = vst [vmem:[#allocation2 + $0x18] sm:$0xff] 0.0
      %77 = vst [vmem:[#allocation2 + $0x20] sm:$0xff] 0.0
      %78 = vst [vmem:[#allocation2 + $0x28] sm:$0xff] 0.0
      %79 = vst [vmem:[#allocation2 + $0x30] sm:$0xff] 0.0
      %80 = vst [vmem:[#allocation2 + $0x38] sm:$0xff] 0.0
      %81 = vst [vmem:[#allocation2 + $0x40] sm:$0xff] 0.0
      %82 = vst [vmem:[#allocation2 + $0x48] sm:$0xff] 0.0
      %83 = vst [vmem:[#allocation2 + $0x50] sm:$0xff] 0.0
      %84 = vst [vmem:[#allocation2 + $0x58] sm:$0xff] 0.0
      %85 = vst [vmem:[#allocation2 + $0x60] sm:$0xff] 0.0
      %86 = vst [vmem:[#allocation2 + $0x68] sm:$0xff] 0.0
      %87 = vst [vmem:[#allocation2 + $0x70] sm:$0xff] 0.0
      %88 = vst [vmem:[#allocation2 + $0x78] sm:$0xff] 0.0
    $region37: #{tpu_custom_call.1} parent=1 // pred_fallthru
      _
    %s89 = smul.u32 0, 128
    %s90 = sshra.s32 %s89, 3
    %s91 = sand.u32 %s89, 7
    %s92 = smul.addr %s90, 4
    %s93 = scalar_lea.vmem [#allocation7], %s92
    %v94 = vld [vmem:[%s93] sm:$0xf]
    %v95 = vld [vmem:[%s93 + $0x4] sm:$0xf]
    %v96 = vld [vmem:[%s93 + $0x8] sm:$0xf]
    %v97 = vld [vmem:[%s93 + $0xc] sm:$0xf]
    %v98 = vld [vmem:[%s93 + $0x10] sm:$0xf]
    %v99 = vld [vmem:[%s93 + $0x14] sm:$0xf]
    %v100 = vld [vmem:[%s93 + $0x18] sm:$0xf]
    %v101 = vld [vmem:[%s93 + $0x1c] sm:$0xf]
    %v102 = vld [vmem:[%s93 + $0x20] sm:$0xf]
    %v103 = vld [vmem:[%s93 + $0x24] sm:$0xf]
    %v104 = vld [vmem:[%s93 + $0x28] sm:$0xf]
    %v105 = vld [vmem:[%s93 + $0x2c] sm:$0xf]
    %v106 = vld [vmem:[%s93 + $0x30] sm:$0xf]
    %v107 = vld [vmem:[%s93 + $0x34] sm:$0xf]
    %v108 = vld [vmem:[%s93 + $0x38] sm:$0xf]
    %v109 = vld [vmem:[%s93 + $0x3c] sm:$0xf]
    %v110 = vld [vmem:[#allocation2] sm:$0xff]
    %v111 = vld [vmem:[#allocation2 + $0x8] sm:$0xff]
    %v112 = vld [vmem:[#allocation2 + $0x10] sm:$0xff]
    %v113 = vld [vmem:[#allocation2 + $0x18] sm:$0xff]
    %v114 = vld [vmem:[#allocation2 + $0x20] sm:$0xff]
    %v115 = vld [vmem:[#allocation2 + $0x28] sm:$0xff]
    %v116 = vld [vmem:[#allocation2 + $0x30] sm:$0xff]
    %v117 = vld [vmem:[#allocation2 + $0x38] sm:$0xff]
    %v118 = vld [vmem:[#allocation2 + $0x40] sm:$0xff]
    %v119 = vld [vmem:[#allocation2 + $0x48] sm:$0xff]
    %v120 = vld [vmem:[#allocation2 + $0x50] sm:$0xff]
    %v121 = vld [vmem:[#allocation2 + $0x58] sm:$0xff]
    %v122 = vld [vmem:[#allocation2 + $0x60] sm:$0xff]
    %v123 = vld [vmem:[#allocation2 + $0x68] sm:$0xff]
    %v124 = vld [vmem:[#allocation2 + $0x70] sm:$0xff]
    %v125 = vld [vmem:[#allocation2 + $0x78] sm:$0xff]
    %v126 = vld [vmem:[#allocation4] sm:$0xf]
    %v127 = vld [vmem:[#allocation4 + $0x4] sm:$0xf]
    %v128 = vld [vmem:[#allocation4 + $0x8] sm:$0xf]
    %v129 = vld [vmem:[#allocation4 + $0xc] sm:$0xf]
    %v130 = vld [vmem:[#allocation4 + $0x10] sm:$0xf]
    %v131 = vld [vmem:[#allocation4 + $0x14] sm:$0xf]
    %v132 = vld [vmem:[#allocation4 + $0x18] sm:$0xf]
    %v133 = vld [vmem:[#allocation4 + $0x1c] sm:$0xf]
    %v134 = vld [vmem:[#allocation4 + $0x20] sm:$0xf]
    %v135 = vld [vmem:[#allocation4 + $0x24] sm:$0xf]
    %v136 = vld [vmem:[#allocation4 + $0x28] sm:$0xf]
    %v137 = vld [vmem:[#allocation4 + $0x2c] sm:$0xf]
    %v138 = vld [vmem:[#allocation4 + $0x30] sm:$0xf]
    %v139 = vld [vmem:[#allocation4 + $0x34] sm:$0xf]
    %v140 = vld [vmem:[#allocation4 + $0x38] sm:$0xf]
    %v141 = vld [vmem:[#allocation4 + $0x3c] sm:$0xf]
    %v158 = vunpack.c.l.b16 %v126
    %v159 = vunpack.c.l.b16 %v127
    %v160 = vunpack.c.l.b16 %v128
    %v161 = vunpack.c.l.b16 %v129
    %v162 = vunpack.c.l.b16 %v130
    %v163 = vunpack.c.l.b16 %v131
    %v164 = vunpack.c.l.b16 %v132
    %v165 = vunpack.c.l.b16 %v133
    %v166 = vunpack.c.l.b16 %v134
    %v167 = vunpack.c.l.b16 %v135
    %v168 = vunpack.c.l.b16 %v136
    %v169 = vunpack.c.l.b16 %v137
    %v170 = vunpack.c.l.b16 %v138
    %v171 = vunpack.c.l.b16 %v139
    %v172 = vunpack.c.l.b16 %v140
    %v173 = vunpack.c.l.b16 %v141
    %v174 = vpack.c.b16 %v159, %v158
    %v175 = vpack.c.b16 %v161, %v160
    %v176 = vpack.c.b16 %v163, %v162
    %v177 = vpack.c.b16 %v165, %v164
    %v178 = vpack.c.b16 %v167, %v166
    %v179 = vpack.c.b16 %v169, %v168
    %v180 = vpack.c.b16 %v171, %v170
    %v181 = vpack.c.b16 %v173, %v172
    %v206 = vunpack.c.l.b16 %v94
    %v207 = vunpack.c.l.b16 %v95
    %v208 = vunpack.c.l.b16 %v96
    %v209 = vunpack.c.l.b16 %v97
    %v210 = vunpack.c.l.b16 %v98
    %v211 = vunpack.c.l.b16 %v99
    %v212 = vunpack.c.l.b16 %v100
    %v213 = vunpack.c.l.b16 %v101
    %v214 = vunpack.c.l.b16 %v102
    %v215 = vunpack.c.l.b16 %v103
    %v216 = vunpack.c.l.b16 %v104
    %v217 = vunpack.c.l.b16 %v105
    %v218 = vunpack.c.l.b16 %v106
    %v219 = vunpack.c.l.b16 %v107
    %v220 = vunpack.c.l.b16 %v108
    %v221 = vunpack.c.l.b16 %v109
    %v222 = vpack.c.b16 %v207, %v206
    %v223 = vpack.c.b16 %v209, %v208
    %v224 = vpack.c.b16 %v211, %v210
    %v225 = vpack.c.b16 %v213, %v212
    %v226 = vpack.c.b16 %v215, %v214
    %v227 = vpack.c.b16 %v217, %v216
    %v228 = vpack.c.b16 %v219, %v218
    %v229 = vpack.c.b16 %v221, %v220
    %238 = vmatpush.bf16.msra.mxu0 %v229
    %239 = vmatpush.bf16.msra.mxu0 %v228
    %240 = vmatpush.bf16.msra.mxu0 %v227
    %241 = vmatpush.bf16.msra.mxu0 %v226
    %242 = vmatpush.bf16.msra.mxu0 %v225
    %243 = vmatpush.bf16.msra.mxu0 %v224
    %244 = vmatpush.bf16.msra.mxu0 %v223
    %245 = vmatpush.bf16.msra.mxu0 %v222
    %246 = vmatmul.bf16.gmra.mxu0 %v174
    %v247 = vpop.f32.mrf.mxu0
    %v248 = vadd.f32 0.0, %v247
    %v249 = vpop.f32.mrf.mxu0
    %v250 = vadd.f32 0.0, %v249
    %251 = vmatmul.bf16.gmra.mxu0 %v175
    %v252 = vpop.f32.mrf.mxu0
    %v253 = vadd.f32 0.0, %v252
    %v254 = vpop.f32.mrf.mxu0
    %v255 = vadd.f32 0.0, %v254
    %256 = vmatmul.bf16.gmra.mxu0 %v176
    %v257 = vpop.f32.mrf.mxu0
    %v258 = vadd.f32 0.0, %v257
    %v259 = vpop.f32.mrf.mxu0
    %v260 = vadd.f32 0.0, %v259
    %261 = vmatmul.bf16.gmra.mxu0 %v177
    %v262 = vpop.f32.mrf.mxu0
    %v263 = vadd.f32 0.0, %v262
    %v264 = vpop.f32.mrf.mxu0
    %v265 = vadd.f32 0.0, %v264
    %266 = vmatmul.bf16.gmra.mxu0 %v178
    %v267 = vpop.f32.mrf.mxu0
    %v268 = vadd.f32 0.0, %v267
    %v269 = vpop.f32.mrf.mxu0
    %v270 = vadd.f32 0.0, %v269
    %271 = vmatmul.bf16.gmra.mxu0 %v179
    %v272 = vpop.f32.mrf.mxu0
    %v273 = vadd.f32 0.0, %v272
    %v274 = vpop.f32.mrf.mxu0
    %v275 = vadd.f32 0.0, %v274
    %276 = vmatmul.bf16.gmra.mxu0 %v180
    %v277 = vpop.f32.mrf.mxu0
    %v278 = vadd.f32 0.0, %v277
    %v279 = vpop.f32.mrf.mxu0
    %v280 = vadd.f32 0.0, %v279
    %281 = vmatmul.bf16.gmra.mxu0 %v181
    %v282 = vpop.f32.mrf.mxu0
    %v283 = vadd.f32 0.0, %v282
    %v284 = vpop.f32.mrf.mxu0
    %v285 = vadd.f32 0.0, %v284
    %286 = vdwg.mxu0
    %v287 = vadd.f32 %v110, %v248
    %v288 = vadd.f32 %v111, %v250
    %v289 = vadd.f32 %v112, %v253
    %v290 = vadd.f32 %v113, %v255
    %v291 = vadd.f32 %v114, %v258
    %v292 = vadd.f32 %v115, %v260
    %v293 = vadd.f32 %v116, %v263
    %v294 = vadd.f32 %v117, %v265
    %v295 = vadd.f32 %v118, %v268
    %v296 = vadd.f32 %v119, %v270
    %v297 = vadd.f32 %v120, %v273
    %v298 = vadd.f32 %v121, %v275
    %v299 = vadd.f32 %v122, %v278
    %v300 = vadd.f32 %v123, %v280
    %v301 = vadd.f32 %v124, %v283
    %v302 = vadd.f32 %v125, %v285
    %303 = vst [vmem:[#allocation2] sm:$0xff] %v287
    %304 = vst [vmem:[#allocation2 + $0x8] sm:$0xff] %v288
    %305 = vst [vmem:[#allocation2 + $0x10] sm:$0xff] %v289
    %306 = vst [vmem:[#allocation2 + $0x18] sm:$0xff] %v290
    %307 = vst [vmem:[#allocation2 + $0x20] sm:$0xff] %v291
    %308 = vst [vmem:[#allocation2 + $0x28] sm:$0xff] %v292
    %309 = vst [vmem:[#allocation2 + $0x30] sm:$0xff] %v293
    %310 = vst [vmem:[#allocation2 + $0x38] sm:$0xff] %v294
    %311 = vst [vmem:[#allocation2 + $0x40] sm:$0xff] %v295
    %312 = vst [vmem:[#allocation2 + $0x48] sm:$0xff] %v296
    %313 = vst [vmem:[#allocation2 + $0x50] sm:$0xff] %v297
    %314 = vst [vmem:[#allocation2 + $0x58] sm:$0xff] %v298
    %315 = vst [vmem:[#allocation2 + $0x60] sm:$0xff] %v299
    %316 = vst [vmem:[#allocation2 + $0x68] sm:$0xff] %v300
    %317 = vst [vmem:[#allocation2 + $0x70] sm:$0xff] %v301
    %318 = vst [vmem:[#allocation2 + $0x78] sm:$0xff] %v302
    // Predicated region
    $region38: #{tpu_custom_call.1} parent=1 // pred_check
      %p319 = pneg %p69
    $region39: #{tpu_custom_call.1} parent=1 // pred_check_branch
      %321 = sbr.rel (%p319) target = $region41
    $region40: #{tpu_custom_call.1} parent=1 // pred_region
      %v322 = vld [vmem:[#allocation2] sm:$0xff]
      %v323 = vld [vmem:[#allocation2 + $0x8] sm:$0xff]
      %v324 = vld [vmem:[#allocation2 + $0x10] sm:$0xff]
      %v325 = vld [vmem:[#allocation2 + $0x18] sm:$0xff]
      %v326 = vld [vmem:[#allocation2 + $0x20] sm:$0xff]
      %v327 = vld [vmem:[#allocation2 + $0x28] sm:$0xff]
      %v328 = vld [vmem:[#allocation2 + $0x30] sm:$0xff]
      %v329 = vld [vmem:[#allocation2 + $0x38] sm:$0xff]
      %v330 = vld [vmem:[#allocation2 + $0x40] sm:$0xff]
      %v331 = vld [vmem:[#allocation2 + $0x48] sm:$0xff]
      %v332 = vld [vmem:[#allocation2 + $0x50] sm:$0xff]
      %v333 = vld [vmem:[#allocation2 + $0x58] sm:$0xff]
      %v334 = vld [vmem:[#allocation2 + $0x60] sm:$0xff]
      %v335 = vld [vmem:[#allocation2 + $0x68] sm:$0xff]
      %v336 = vld [vmem:[#allocation2 + $0x70] sm:$0xff]
      %v337 = vld [vmem:[#allocation2 + $0x78] sm:$0xff]
      %v338 = vld [vmem:[#allocation9] sm:$0xff]
      %v339 = vld [vmem:[#allocation9 + $0x8] sm:$0xff]
      %v340 = vld [vmem:[#allocation9 + $0x10] sm:$0xff]
      %v341 = vld [vmem:[#allocation9 + $0x18] sm:$0xff]
      %v342 = vld [vmem:[#allocation9 + $0x20] sm:$0xff]
      %v343 = vld [vmem:[#allocation9 + $0x28] sm:$0xff]
      %v344 = vld [vmem:[#allocation9 + $0x30] sm:$0xff]
      %v345 = vld [vmem:[#allocation9 + $0x38] sm:$0xff]
      %v346 = vld [vmem:[#allocation9 + $0x40] sm:$0xff]
      %v347 = vld [vmem:[#allocation9 + $0x48] sm:$0xff]
      %v348 = vld [vmem:[#allocation9 + $0x50] sm:$0xff]
      %v349 = vld [vmem:[#allocation9 + $0x58] sm:$0xff]
      %v350 = vld [vmem:[#allocation9 + $0x60] sm:$0xff]
      %v351 = vld [vmem:[#allocation9 + $0x68] sm:$0xff]
      %v352 = vld [vmem:[#allocation9 + $0x70] sm:$0xff]
      %v353 = vld [vmem:[#allocation9 + $0x78] sm:$0xff]
      %v354 = vld [vmem:[%s3] sm:$0x1]
      %v356 = vperm.slane %v354, 0
      %358 = vmatpush.msra.mxu0 %v353
      %359 = vmatpush.msra.mxu0 %v352
      %360 = vmatpush.msra.mxu0 %v351
      %361 = vmatpush.msra.mxu0 %v350
      %362 = vmatpush.msra.mxu0 %v349
      %363 = vmatpush.msra.mxu0 %v348
      %364 = vmatpush.msra.mxu0 %v347
      %365 = vmatpush.msra.mxu0 %v346
      %366 = vmatpush.msra.mxu0 %v345
      %367 = vmatpush.msra.mxu0 %v344
      %368 = vmatpush.msra.mxu0 %v343
      %369 = vmatpush.msra.mxu0 %v342
      %370 = vmatpush.msra.mxu0 %v341
      %371 = vmatpush.msra.mxu0 %v340
      %372 = vmatpush.msra.mxu0 %v339
      %373 = vmatpush.msra.mxu0 %v338
      %374 = vmatmul.f32.gmra.mxu0 %v322
      %v375 = vpop.f32.mrf.mxu0
      %v376 = vadd.f32 %v356, %v375
      %377 = vmatmul.f32.gmra.mxu0 %v323
      %v378 = vpop.f32.mrf.mxu0
      %v379 = vadd.f32 %v356, %v378
      %380 = vmatmul.f32.gmra.mxu0 %v324
      %v381 = vpop.f32.mrf.mxu0
      %v382 = vadd.f32 %v356, %v381
      %383 = vmatmul.f32.gmra.mxu0 %v325
      %v384 = vpop.f32.mrf.mxu0
      %v385 = vadd.f32 %v356, %v384
      %386 = vmatmul.f32.gmra.mxu0 %v326
      %v387 = vpop.f32.mrf.mxu0
      %v388 = vadd.f32 %v356, %v387
      %389 = vmatmul.f32.gmra.mxu0 %v327
      %v390 = vpop.f32.mrf.mxu0
      %v391 = vadd.f32 %v356, %v390
      %392 = vmatmul.f32.gmra.mxu0 %v328
      %v393 = vpop.f32.mrf.mxu0
      %v394 = vadd.f32 %v356, %v393
      %395 = vmatmul.f32.gmra.mxu0 %v329
      %v396 = vpop.f32.mrf.mxu0
      %v397 = vadd.f32 %v356, %v396
      %398 = vmatmul.f32.gmra.mxu0 %v330
      %v399 = vpop.f32.mrf.mxu0
      %v400 = vadd.f32 %v356, %v399
      %401 = vmatmul.f32.gmra.mxu0 %v331
      %v402 = vpop.f32.mrf.mxu0
      %v403 = vadd.f32 %v356, %v402
      %404 = vmatmul.f32.gmra.mxu0 %v332
      %v405 = vpop.f32.mrf.mxu0
      %v406 = vadd.f32 %v356, %v405
      %407 = vmatmul.f32.gmra.mxu0 %v333
      %v408 = vpop.f32.mrf.mxu0
      %v409 = vadd.f32 %v356, %v408
      %410 = vmatmul.f32.gmra.mxu0 %v334
      %v411 = vpop.f32.mrf.mxu0
      %v412 = vadd.f32 %v356, %v411
      %413 = vmatmul.f32.gmra.mxu0 %v335
      %v414 = vpop.f32.mrf.mxu0
      %v415 = vadd.f32 %v356, %v414
      %416 = vmatmul.f32.gmra.mxu0 %v336
      %v417 = vpop.f32.mrf.mxu0
      %v418 = vadd.f32 %v356, %v417
      %419 = vmatmul.f32.gmra.mxu0 %v337
      %v420 = vpop.f32.mrf.mxu0
      %v421 = vadd.f32 %v356, %v420
      %422 = vdwg.mxu0
      %s423 = sld [smem:[#allocation3]]
      %vm424 = vcmp.gt.f32.partialorder %v376, 0.0
      %vm425 = vcmp.gt.f32.partialorder %v379, 0.0
      %vm426 = vcmp.gt.f32.partialorder %v382, 0.0
      %vm427 = vcmp.gt.f32.partialorder %v385, 0.0
      %vm428 = vcmp.gt.f32.partialorder %v388, 0.0
      %vm429 = vcmp.gt.f32.partialorder %v391, 0.0
      %vm430 = vcmp.gt.f32.partialorder %v394, 0.0
      %vm431 = vcmp.gt.f32.partialorder %v397, 0.0
      %vm432 = vcmp.gt.f32.partialorder %v400, 0.0
      %vm433 = vcmp.gt.f32.partialorder %v403, 0.0
      %vm434 = vcmp.gt.f32.partialorder %v406, 0.0
      %vm435 = vcmp.gt.f32.partialorder %v409, 0.0
      %vm436 = vcmp.gt.f32.partialorder %v412, 0.0
      %vm437 = vcmp.gt.f32.partialorder %v415, 0.0
      %vm438 = vcmp.gt.f32.partialorder %v418, 0.0
      %vm439 = vcmp.gt.f32.partialorder %v421, 0.0
      %v440 = vstv %s423
      %v441 = vmul.f32 %v440, %v376
      %v442 = vmul.f32 %v440, %v379
      %v443 = vmul.f32 %v440, %v382
      %v444 = vmul.f32 %v440, %v385
      %v445 = vmul.f32 %v440, %v388
      %v446 = vmul.f32 %v440, %v391
      %v447 = vmul.f32 %v440, %v394
      %v448 = vmul.f32 %v440, %v397
      %v449 = vmul.f32 %v440, %v400
      %v450 = vmul.f32 %v440, %v403
      %v451 = vmul.f32 %v440, %v406
      %v452 = vmul.f32 %v440, %v409
      %v453 = vmul.f32 %v440, %v412
      %v454 = vmul.f32 %v440, %v415
      %v455 = vmul.f32 %v440, %v418
      %v456 = vmul.f32 %v440, %v421
      %v457 = vsel %vm424, %v376, %v441
      %v458 = vsel %vm425, %v379, %v442
      %v459 = vsel %vm426, %v382, %v443
      %v460 = vsel %vm427, %v385, %v444
      %v461 = vsel %vm428, %v388, %v445
      %v462 = vsel %vm429, %v391, %v446
      %v463 = vsel %vm430, %v394, %v447
      %v464 = vsel %vm431, %v397, %v448
      %v465 = vsel %vm432, %v400, %v449
      %v466 = vsel %vm433, %v403, %v450
      %v467 = vsel %vm434, %v406, %v451
      %v468 = vsel %vm435, %v409, %v452
      %v469 = vsel %vm436, %v412, %v453
      %v470 = vsel %vm437, %v415, %v454
      %v471 = vsel %vm438, %v418, %v455
      %v472 = vsel %vm439, %v421, %v456
      %473 = vst [vmem:[#allocation10] sm:$0xff] %v457
      %474 = vst [vmem:[#allocation10 + $0x8] sm:$0xff] %v458
      %475 = vst [vmem:[#allocation10 + $0x10] sm:$0xff] %v459
      %476 = vst [vmem:[#allocation10 + $0x18] sm:$0xff] %v460
      %477 = vst [vmem:[#allocation10 + $0x20] sm:$0xff] %v461
      %478 = vst [vmem:[#allocation10 + $0x28] sm:$0xff] %v462
      %479 = vst [vmem:[#allocation10 + $0x30] sm:$0xff] %v463
      %480 = vst [vmem:[#allocation10 + $0x38] sm:$0xff] %v464
      %481 = vst [vmem:[#allocation10 + $0x40] sm:$0xff] %v465
      %482 = vst [vmem:[#allocation10 + $0x48] sm:$0xff] %v466
      %483 = vst [vmem:[#allocation10 + $0x50] sm:$0xff] %v467
      %484 = vst [vmem:[#allocation10 + $0x58] sm:$0xff] %v468
      %485 = vst [vmem:[#allocation10 + $0x60] sm:$0xff] %v469
      %486 = vst [vmem:[#allocation10 + $0x68] sm:$0xff] %v470
      %487 = vst [vmem:[#allocation10 + $0x70] sm:$0xff] %v471
      %488 = vst [vmem:[#allocation10 + $0x78] sm:$0xff] %v472
    $region41: #{tpu_custom_call.1} parent=1 // pred_fallthru
      _
    // Predicated region
    $region42: #{tpu_custom_call.1} parent=1 // pred_check
      _
    $region43: #{tpu_custom_call.1} parent=1 // pred_check_branch
      %490 = sbr.rel (0) target = $region45
    $region44: #{tpu_custom_call.1} parent=1 // pred_region
      %492 = vsyncadd [#allocation6], 0
      %s493 = sshll.u32 [#allocation10], 4
      %s494 = int_to_ptr.vmem [resolvable:$true] %s493
      %s495 = sshll.u32 %s5, 4
      %s496 = int_to_ptr.hbm [resolvable:$true] %s495
      %501 = dma.vmem_to_hbm [thread:$0]  %s494, 2048, %s496, [#allocation6], 128, 128, 8
    $region45: #{tpu_custom_call.1} parent=1 // pred_fallthru
      _
    // Predicated region
    $region46: #{tpu_custom_call.1} parent=1 // pred_check
      _
    $region47: #{tpu_custom_call.1} parent=1 // pred_check_branch
      %503 = sbr.rel (0) target = $region49
    $region48: #{tpu_custom_call.1} parent=1 // pred_region
      %505 = dma.done [#allocation6], 2048
    $region49: #{tpu_custom_call.1} parent=1 // pred_fallthru
      _
    %506 = vsyncpa [#allocation5], 1
    %507 = vsyncpa [#allocation8], 1
    %508 = vsyncpa [#allocation6], 1

</llo_original>
